<compile_context>
chip_gen: v5e
topology: v5e:2x2
jax: 0.10.0
libtpu: 0.0.40
codegen_flags: <defaults>
</compile_context>

<pallas_src>
import jax
import jax.numpy as jnp
from jax.experimental import pallas as pl
from jax.experimental.pallas import tpu as pltpu

HIDDEN = 64           # per-branch hidden width, fixed by the module
H2 = 2 * HIDDEN       # fused hidden width (actor || critic) = 128
LANE = 128


def _round_up(x, m):
    return (x + m - 1) // m * m


def _fused_kernel(obs_ref, w1_ref, b1_ref, w2_ref, b2_ref, out_ref):
    # obs arrives unpadded f32; cast to the matmul dtype in-kernel (VPU op,
    # hidden under the obs DMA).
    x = obs_ref[...].astype(w1_ref.dtype)
    # Fused first layer: [tb, K] @ [K, 128] on the MXU, f32 accumulation.
    h = jnp.dot(x, w1_ref[...], preferred_element_type=jnp.float32)
    h = jnp.maximum(h + b1_ref[...], 0.0)              # bias + ReLU in f32 (VPU)
    # Fused block-diagonal head: [tb, 128] @ [128, 128].
    y = jnp.dot(h.astype(w2_ref.dtype), w2_ref[...],
                preferred_element_type=jnp.float32)
    # Single lane-dense [tb, 128] store (unmasked vst).
    out_ref[...] = (y + b2_ref[...]).astype(out_ref.dtype)


def pack_params(params, obs_dim, action_dim, compute_dtype=jnp.bfloat16):
    """Pack the 4 PyTorch-style linears into fused weights.  Call ONCE at init."""
    n_pad = _round_up(action_dim + 1, LANE)

    def _bias2d(b):
        return jnp.asarray(b, jnp.float32).reshape(1, -1)

    wa1 = jnp.asarray(params["wa1"], jnp.float32)
    wc1 = jnp.asarray(params["wc1"], jnp.float32)
    assert wa1.shape == (obs_dim, HIDDEN) and wc1.shape == (obs_dim, HIDDEN)

    # Fused first layer: [obs_dim, 128] (no K padding -> K is the full dim).
    w1 = jnp.concatenate([wa1, wc1], axis=1)
    b1 = jnp.concatenate([_bias2d(params["ba1"]), _bias2d(params["bc1"])], axis=1)

    # Block-diagonal head: actor rows 0..63 -> lanes 0..A-1,
    # critic rows 64..127 -> lane A.  Padded lanes are exact zeros.
    w2 = jnp.zeros((H2, n_pad), jnp.float32)
    w2 = w2.at[:HIDDEN, :action_dim].set(jnp.asarray(params["wa2"], jnp.float32))
    w2 = w2.at[HIDDEN:, action_dim:action_dim + 1].set(
        jnp.asarray(params["wc2"], jnp.float32))
    b2 = jnp.zeros((1, n_pad), jnp.float32)
    b2 = b2.at[:, :action_dim].set(_bias2d(params["ba2"]))
    b2 = b2.at[:, action_dim:action_dim + 1].set(_bias2d(params["bc2"]))

    # Matmul operands in compute dtype; biases stay f32 (added post-matmul).
    return dict(w1=w1.astype(compute_dtype), b1=b1,
                w2=w2.astype(compute_dtype), b2=b2)


def naive_actor_critic(obs, packed, *, action_dim, block_b=4096, out_dtype=None,
                       vmem_limit_bytes=32 * 1024 * 1024):
    """obs: [B, obs_dim] float32 (unpadded). packed: output of pack_params.

    Returns {'logit': [B, A], 'value': [B, 1]} in out_dtype
    (defaults to the packed compute dtype).
    """
    B, obs_dim = obs.shape
    w1, b1, w2, b2 = packed["w1"], packed["b1"], packed["w2"], packed["b2"]
    assert w1.shape == (obs_dim, H2)
    n_pad = w2.shape[1]
    compute_dtype = w1.dtype
    out_dtype = compute_dtype if out_dtype is None else out_dtype
    in_bytes = jnp.dtype(compute_dtype).itemsize
    out_bytes = jnp.dtype(out_dtype).itemsize

    # ---- batch tile from a VMEM budget ------------------------------------
    # Double-buffered pipelined streams per batch row (obs stays f32 in HBM):
    per_row = 2 * obs_dim * 4 + 2 * n_pad * out_bytes
    # Resident weights/biases (BlockSpec default double-buffers them too):
    fixed = 2 * ((obs_dim * H2 + H2 * n_pad) * in_bytes + (H2 + n_pad) * 4)
    budget = vmem_limit_bytes - fixed - (2 << 20)          # ~2 MiB headroom
    tb_cap = max(16, (budget // per_row) // 16 * 16)        # multiple of 16 (bf16 sublanes)
    tb_cap = min(block_b, tb_cap)

    if B <= tb_cap:
        tb = B          # single block: full-dim block shape is always legal
    else:
        tb = (tb_cap // 16) * 16   # partial last block handled by Pallas (masked writes)
    grid_b = pl.cdiv(B, tb)

    cost = pl.CostEstimate(
        flops=2 * B * obs_dim * H2 + 2 * B * H2 * n_pad,
        transcendentals=0,
        bytes_accessed=(B * obs_dim * 4 + B * n_pad * out_bytes
                        + (w1.size + w2.size) * in_bytes
                        + (b1.size + b2.size) * 4),
    )

    out = pl.pallas_call(
        _fused_kernel,
        out_shape=jax.ShapeDtypeStruct((B, n_pad), out_dtype),
        grid_spec=pltpu.PrefetchScalarGridSpec(
            num_scalar_prefetch=0,
            grid=(grid_b,),
            in_specs=[
                pl.BlockSpec((tb, obs_dim), lambda i: (i, 0)),  # obs: unpadded f32 tiles
                pl.BlockSpec((obs_dim, H2), lambda i: (0, 0)),  # weights/biases: constant
                pl.BlockSpec((1, H2), lambda i: (0, 0)),        #   index -> VMEM-resident
                pl.BlockSpec((H2, n_pad), lambda i: (0, 0)),
                pl.BlockSpec((1, n_pad), lambda i: (0, 0)),
            ],
            out_specs=pl.BlockSpec((tb, n_pad), lambda i: (i, 0)),
        ),
        compiler_params=pltpu.CompilerParams(
            dimension_semantics=("parallel",),   # batch tiles are independent
            vmem_limit_bytes=vmem_limit_bytes,
        ),
        cost_estimate=cost,
    )(obs, w1, b1, w2, b2)

    # Single lane slice of the slab, then split the small head.
    head = out[:, :action_dim + 1]
    logit = head[:, :action_dim]
    value = head[:, action_dim:action_dim + 1]
    return {"logit": logit, "value": value}


def init_params(key, obs_dim, action_dim):
    """Deterministic synthetic init (PyTorch-like uniform fan-in scaling)."""
    ks = jax.random.split(key, 8)

    def lin(kw, kb, fan_in, fan_out):
        bound = 1.0 / jnp.sqrt(float(fan_in))
        w = jax.random.uniform(kw, (fan_in, fan_out), jnp.float32, -bound, bound)
        b = jax.random.uniform(kb, (1, fan_out), jnp.float32, -bound, bound)
        return w, b

    wa1, ba1 = lin(ks[0], ks[1], obs_dim, HIDDEN)
    wa2, ba2 = lin(ks[2], ks[3], HIDDEN, action_dim)
    wc1, bc1 = lin(ks[4], ks[5], obs_dim, HIDDEN)
    wc2, bc2 = lin(ks[6], ks[7], HIDDEN, 1)
    return dict(wa1=wa1, ba1=ba1, wa2=wa2, ba2=ba2,
                wc1=wc1, bc1=bc1, wc2=wc2, bc2=bc2)


def _reference(obs, p):
    ha = jnp.maximum(obs @ p["wa1"] + p["ba1"], 0.0)
    logit = ha @ p["wa2"] + p["ba2"]
    hc = jnp.maximum(obs @ p["wc1"] + p["bc1"], 0.0)
    value = hc @ p["wc2"] + p["bc2"]
    return {"logit": logit, "value": value}


if __name__ == "__main__":
    B, obs_dim, action_dim = 8, 32, 8
    key = jax.random.PRNGKey(0)
    k_obs, k_param = jax.random.split(key)

    obs = jax.random.normal(k_obs, (B, obs_dim), jnp.float32)
    params = init_params(k_param, obs_dim, action_dim)
    ref = _reference(obs, params)

    # Exact path (f32 matmuls + f32 output slab): packed once, reused per call.
    packed_f32 = pack_params(params, obs_dim, action_dim, compute_dtype=jnp.float32)
    out_f32 = naive_actor_critic(obs, packed_f32, action_dim=action_dim)
    jax.block_until_ready(out_f32)
    assert out_f32["logit"].shape == (B, action_dim)
    assert out_f32["value"].shape == (B, 1)
    assert jnp.allclose(out_f32["logit"], ref["logit"], atol=1e-5)
    assert jnp.allclose(out_f32["value"], ref["value"], atol=1e-5)

    # Fast path (bf16 matmuls, f32 accumulation, bf16 output slab).
    packed_bf16 = pack_params(params, obs_dim, action_dim, compute_dtype=jnp.bfloat16)
    out_bf16 = naive_actor_critic(obs, packed_bf16, action_dim=action_dim)
    jax.block_until_ready(out_bf16)
    assert out_bf16["logit"].shape == (B, action_dim)
    assert out_bf16["value"].shape == (B, 1)
    assert jnp.allclose(out_bf16["logit"].astype(jnp.float32), ref["logit"],
                        atol=1e-1, rtol=1e-1)
    assert jnp.allclose(out_bf16["value"].astype(jnp.float32), ref["value"],
                        atol=1e-1, rtol=1e-1)

    print("KERNEL_OK")
</pallas_src>

<mosaic_0001>
module attributes {stable_mosaic.version = 11 : i64} {
  func.func @_fused_kernel(%arg0: i32, %arg1: memref<8x32xf32, #tpu.memory_space<vmem>>, %arg2: memref<32x128xf32, #tpu.memory_space<vmem>>, %arg3: memref<1x128xf32, #tpu.memory_space<vmem>>, %arg4: memref<128x128xf32, #tpu.memory_space<vmem>>, %arg5: memref<1x128xf32, #tpu.memory_space<vmem>>, %arg6: memref<8x128xf32, #tpu.memory_space<vmem>>) attributes {dimension_semantics = [#tpu.dimension_semantics<parallel>], iteration_bounds = array<i64: 1>, scalar_prefetch = 0 : i64, scratch_operands = 0 : i64, tpu.core_type = #tpu.core_type<tc>, window_params = [{transform_indices = @transform_0, window_bounds = array<i64: 8, 32>}, {pipeline_mode = #tpu.pipeline_mode<synchronous>, transform_indices = @transform_1, window_bounds = array<i64: 32, 128>}, {pipeline_mode = #tpu.pipeline_mode<synchronous>, transform_indices = @transform_2, window_bounds = array<i64: 1, 128>}, {pipeline_mode = #tpu.pipeline_mode<synchronous>, transform_indices = @transform_3, window_bounds = array<i64: 128, 128>}, {pipeline_mode = #tpu.pipeline_mode<synchronous>, transform_indices = @transform_4, window_bounds = array<i64: 1, 128>}, {transform_indices = @transform_5, window_bounds = array<i64: 8, 128>}]} {
    %c0 = arith.constant 0 : index
    %c0_0 = arith.constant 0 : index
    %0 = vector.load %arg1[%c0, %c0_0] : memref<8x32xf32, #tpu.memory_space<vmem>>, vector<8x32xf32>
    %c0_1 = arith.constant 0 : index
    %c0_2 = arith.constant 0 : index
    %1 = vector.load %arg2[%c0_1, %c0_2] : memref<32x128xf32, #tpu.memory_space<vmem>>, vector<32x128xf32>
    %cst = arith.constant dense<0.000000e+00> : vector<8x128xf32>
    %2 = tpu.matmul %0, %1, %cst {dimension_numbers = #tpu.dot_dimension_numbers<[1], [0], [0], [1], [0, 0, 1, 1], [], []>} : vector<8x32xf32>, vector<32x128xf32>, vector<8x128xf32> -> vector<8x128xf32>
    %c0_3 = arith.constant 0 : index
    %c0_4 = arith.constant 0 : index
    %3 = vector.load %arg3[%c0_3, %c0_4] : memref<1x128xf32, #tpu.memory_space<vmem>>, vector<1x128xf32>
    %4 = vector.broadcast %3 : vector<1x128xf32> to vector<8x128xf32>
    %5 = arith.addf %2, %4 : vector<8x128xf32>
    %cst_5 = arith.constant 0.000000e+00 : f32
    %6 = vector.broadcast %cst_5 : f32 to vector<8x128xf32>
    %7 = arith.maximumf %5, %6 : vector<8x128xf32>
    %c0_6 = arith.constant 0 : index
    %c0_7 = arith.constant 0 : index
    %8 = vector.load %arg4[%c0_6, %c0_7] : memref<128x128xf32, #tpu.memory_space<vmem>>, vector<128x128xf32>
    %cst_8 = arith.constant dense<0.000000e+00> : vector<8x128xf32>
    %9 = tpu.matmul %7, %8, %cst_8 {dimension_numbers = #tpu.dot_dimension_numbers<[1], [0], [0], [1], [0, 0, 1, 1], [], []>} : vector<8x128xf32>, vector<128x128xf32>, vector<8x128xf32> -> vector<8x128xf32>
    %c0_9 = arith.constant 0 : index
    %c0_10 = arith.constant 0 : index
    %10 = vector.load %arg5[%c0_9, %c0_10] : memref<1x128xf32, #tpu.memory_space<vmem>>, vector<1x128xf32>
    %11 = vector.broadcast %10 : vector<1x128xf32> to vector<8x128xf32>
    %12 = arith.addf %9, %11 : vector<8x128xf32>
    %c0_11 = arith.constant 0 : index
    %c0_12 = arith.constant 0 : index
    %13 = vector.load %arg6[%c0_11, %c0_12] : memref<8x128xf32, #tpu.memory_space<vmem>>, vector<8x128xf32>
    tpu.vector_store %arg6[%c0_11, %c0_12], %12 {strides = array<i32>} : memref<8x128xf32, #tpu.memory_space<vmem>>, vector<8x128xf32>,
    return
  }
  func.func @transform_0(%arg0: i32) -> (i32, i32) {
    %c0_i32 = arith.constant 0 : i32
    %c0_i32_0 = arith.constant 0 : i32
    return %arg0, %c0_i32 : i32, i32
  }
  func.func @transform_1(%arg0: i32) -> (i32, i32) {
    %c0_i32 = arith.constant 0 : i32
    %c0_i32_0 = arith.constant 0 : i32
    %c0_i32_1 = arith.constant 0 : i32
    return %c0_i32, %c0_i32_0 : i32, i32
  }
  func.func @transform_2(%arg0: i32) -> (i32, i32) {
    %c0_i32 = arith.constant 0 : i32
    %c0_i32_0 = arith.constant 0 : i32
    %c0_i32_1 = arith.constant 0 : i32
    return %c0_i32, %c0_i32_0 : i32, i32
  }
  func.func @transform_3(%arg0: i32) -> (i32, i32) {
    %c0_i32 = arith.constant 0 : i32
    %c0_i32_0 = arith.constant 0 : i32
    %c0_i32_1 = arith.constant 0 : i32
    return %c0_i32, %c0_i32_0 : i32, i32
  }
  func.func @transform_4(%arg0: i32) -> (i32, i32) {
    %c0_i32 = arith.constant 0 : i32
    %c0_i32_0 = arith.constant 0 : i32
    %c0_i32_1 = arith.constant 0 : i32
    return %c0_i32, %c0_i32_0 : i32, i32
  }
  func.func @transform_5(%arg0: i32) -> (i32, i32) {
    %c0_i32 = arith.constant 0 : i32
    %c0_i32_0 = arith.constant 0 : i32
    return %arg0, %c0_i32 : i32, i32
  }
}

</mosaic_0001>

<llo_original>
// kernel: tpu_custom_call.1
$region0: #{tpu_custom_call.1}
  #allocation0 [shape = 'u32[]', space=smem, size = 0x4, offset = 0x4, fixed_abs, tag = 'smem constant byte address 0x4 - core index']
  #allocation1 [shape = 'u32[72,128]{1,0:T(1,128)}', space=vmem, size = 0x9000, scoped, tag = 'internal scratch']
  %s0 = inlined_call_operand.hbm [shape: f32[8,32], index: 0, kind: input, shape index: {}]
  %s1 = inlined_call_operand.hbm [shape: f32[32,128], index: 1, kind: input, shape index: {}]
  %s2 = inlined_call_operand.vmem [shape: f32[1,128], index: 2, kind: input, shape index: {}]
  %s3 = inlined_call_operand.hbm [shape: f32[128,128], index: 3, kind: input, shape index: {}]
  %s4 = inlined_call_operand.vmem [shape: f32[1,128], index: 4, kind: input, shape index: {}]
  %s5 = inlined_call_operand.hbm [shape: f32[8,128], index: 5, kind: output, shape index: {}]
  %s6 = sld [smem:[#allocation0]]
  $region42: #{tpu_custom_call.1} parent=0
    _
  %s8 = ssub.s32 1, %s6
  %s9 = scalar_select 0, %s8, %s6
  $region1: #{tpu_custom_call.1} parent=0
    #allocation2 [shape = 'u8[4096]{0}', space=vmem, size = 0x1000, scoped, tag = 'input window, operand 0, single buffered']
    #allocation3 [shape = 's32[1]{0}', space=sflag, size = 0x4, scoped, tag = 'scoped memory for tpu_custom_call.1']
    #allocation4 [shape = 's32[1]{0}', space=sflag, size = 0x4, scoped, tag = 'scoped memory for tpu_custom_call.1']
    #allocation5 [shape = 'u8[16384]{0}', space=vmem, size = 0x4000, scoped, tag = 'input window, operand 1, single buffered']
    #allocation6 [shape = 's32[1]{0}', space=sflag, size = 0x4, scoped, tag = 'scoped memory for tpu_custom_call.1']
    #allocation7 [shape = 'u8[65536]{0}', space=vmem, size = 0x10000, scoped, tag = 'input window, operand 3, single buffered']
    #allocation8 [shape = 'u8[4096]{0}', space=vmem, size = 0x1000, scoped, tag = 'output window, operand 0, single buffered']
    %10 = vsyncpa [#allocation3], 0
    %11 = vsyncpa [#allocation6], 0
    %12 = vsyncpa [#allocation4], 0
    // Predicated region
    $region2: #{tpu_custom_call.1} parent=1 // pred_check
      _
    $region3: #{tpu_custom_call.1} parent=1 // pred_check_branch
      %14 = sbr.rel (0) target = $region5
    $region4: #{tpu_custom_call.1} parent=1 // pred_region
      %16 = vsyncadd [#allocation3], 0
      %s18 = sshll.u32 %s0, 4
      %s19 = int_to_ptr.hbm [resolvable:$true] %s18
      %s20 = sshll.u32 [#allocation2], 4
      %s21 = int_to_ptr.vmem [resolvable:$true] %s20
      %23 = dma.hbm_to_vmem [thread:$0]  %s19, 128, %s21, [#allocation3]
    $region5: #{tpu_custom_call.1} parent=1 // pred_fallthru
      _
    // Predicated region
    $region6: #{tpu_custom_call.1} parent=1 // pred_check
      _
    $region7: #{tpu_custom_call.1} parent=1 // pred_check_branch
      %25 = sbr.rel (0) target = $region9
    $region8: #{tpu_custom_call.1} parent=1 // pred_region
      %27 = vsyncadd [#allocation6], 0
      %s28 = sshll.u32 %s1, 4
      %s29 = int_to_ptr.hbm [resolvable:$true] %s28
      %s30 = sshll.u32 [#allocation5], 4
      %s31 = int_to_ptr.vmem [resolvable:$true] %s30
      %36 = dma.hbm_to_vmem [thread:$0]  %s29, 512, %s31, [#allocation6], 128, 128, 8
    $region9: #{tpu_custom_call.1} parent=1 // pred_fallthru
      _
    // Predicated region
    $region10: #{tpu_custom_call.1} parent=1 // pred_check
      _
    $region11: #{tpu_custom_call.1} parent=1 // pred_check_branch
      %38 = sbr.rel (0) target = $region13
    $region12: #{tpu_custom_call.1} parent=1 // pred_region
      _
    $region13: #{tpu_custom_call.1} parent=1 // pred_fallthru
      _
    // Predicated region
    $region14: #{tpu_custom_call.1} parent=1 // pred_check
      _
    $region15: #{tpu_custom_call.1} parent=1 // pred_check_branch
      %40 = sbr.rel (0) target = $region17
    $region16: #{tpu_custom_call.1} parent=1 // pred_region
      %42 = vsyncadd [#allocation6], 0
      %s43 = sshll.u32 %s3, 4
      %s44 = int_to_ptr.hbm [resolvable:$true] %s43
      %s45 = sshll.u32 [#allocation7], 4
      %s46 = int_to_ptr.vmem [resolvable:$true] %s45
      %51 = dma.hbm_to_vmem [thread:$0]  %s44, 2048, %s46, [#allocation6], 128, 128, 8
    $region17: #{tpu_custom_call.1} parent=1 // pred_fallthru
      _
    // Predicated region
    $region18: #{tpu_custom_call.1} parent=1 // pred_check
      _
    $region19: #{tpu_custom_call.1} parent=1 // pred_check_branch
      %53 = sbr.rel (0) target = $region21
    $region20: #{tpu_custom_call.1} parent=1 // pred_region
      _
    $region21: #{tpu_custom_call.1} parent=1 // pred_fallthru
      _
    // Predicated region
    $region22: #{tpu_custom_call.1} parent=1 // pred_check
      _
    $region23: #{tpu_custom_call.1} parent=1 // pred_check_branch
      %55 = sbr.rel (0) target = $region25
    $region24: #{tpu_custom_call.1} parent=1 // pred_region
      %57 = dma.done [#allocation3], 128
    $region25: #{tpu_custom_call.1} parent=1 // pred_fallthru
      _
    // Predicated region
    $region26: #{tpu_custom_call.1} parent=1 // pred_check
      _
    $region27: #{tpu_custom_call.1} parent=1 // pred_check_branch
      %59 = sbr.rel (0) target = $region29
    $region28: #{tpu_custom_call.1} parent=1 // pred_region
      %61 = dma.done [#allocation6], 512
    $region29: #{tpu_custom_call.1} parent=1 // pred_fallthru
      _
    // Predicated region
    $region30: #{tpu_custom_call.1} parent=1 // pred_check
      _
    $region31: #{tpu_custom_call.1} parent=1 // pred_check_branch
      %63 = sbr.rel (0) target = $region33
    $region32: #{tpu_custom_call.1} parent=1 // pred_region
      %65 = dma.done [#allocation6], 2048
    $region33: #{tpu_custom_call.1} parent=1 // pred_fallthru
      _
    %v66 = vld [vmem:[#allocation2] sm:$0xff]
    %v67 = vld [vmem:[#allocation5] sm:$0xff]
    %v68 = vld [vmem:[#allocation5 + $0x8] sm:$0xff]
    %v69 = vld [vmem:[#allocation5 + $0x10] sm:$0xff]
    %v70 = vld [vmem:[#allocation5 + $0x18] sm:$0xff]
    %v71 = vld [vmem:[%s2] sm:$0x1]
    %v73 = vperm.slane %v71, 0
    %vm75 = vcmask 261120
    %v77 = vsel %vm75, %v66, 0
    %79 = vmatpush.msra.mxu0 0.0
    %80 = vmatpush.msra.mxu0 0.0
    %81 = vmatpush.msra.mxu0 0.0
    %82 = vmatpush.msra.mxu0 0.0
    %83 = vmatpush.msra.mxu0 0.0
    %84 = vmatpush.msra.mxu0 0.0
    %85 = vmatpush.msra.mxu0 0.0
    %86 = vmatpush.msra.mxu0 0.0
    %87 = vmatpush.msra.mxu0 0.0
    %88 = vmatpush.msra.mxu0 0.0
    %89 = vmatpush.msra.mxu0 0.0
    %90 = vmatpush.msra.mxu0 0.0
    %91 = vmatpush.msra.mxu0 %v70
    %92 = vmatpush.msra.mxu0 %v69
    %93 = vmatpush.msra.mxu0 %v68
    %94 = vmatpush.msra.mxu0 %v67
    %95 = vmatmul.f32.gmra.mxu0 %v77
    %v96 = vpop.f32.mrf.mxu0
    %v97 = vadd.f32 %v73, %v96
    %98 = vdwg.mxu0
    %v99 = vmax.f32 %v97, 0.0
    %v100 = vld [vmem:[#allocation7] sm:$0xff]
    %v101 = vld [vmem:[#allocation7 + $0x8] sm:$0xff]
    %v102 = vld [vmem:[#allocation7 + $0x10] sm:$0xff]
    %v103 = vld [vmem:[#allocation7 + $0x18] sm:$0xff]
    %v104 = vld [vmem:[#allocation7 + $0x20] sm:$0xff]
    %v105 = vld [vmem:[#allocation7 + $0x28] sm:$0xff]
    %v106 = vld [vmem:[#allocation7 + $0x30] sm:$0xff]
    %v107 = vld [vmem:[#allocation7 + $0x38] sm:$0xff]
    %v108 = vld [vmem:[#allocation7 + $0x40] sm:$0xff]
    %v109 = vld [vmem:[#allocation7 + $0x48] sm:$0xff]
    %v110 = vld [vmem:[#allocation7 + $0x50] sm:$0xff]
    %v111 = vld [vmem:[#allocation7 + $0x58] sm:$0xff]
    %v112 = vld [vmem:[#allocation7 + $0x60] sm:$0xff]
    %v113 = vld [vmem:[#allocation7 + $0x68] sm:$0xff]
    %v114 = vld [vmem:[#allocation7 + $0x70] sm:$0xff]
    %v115 = vld [vmem:[#allocation7 + $0x78] sm:$0xff]
    %v116 = vld [vmem:[%s4] sm:$0x1]
    %v118 = vperm.slane %v116, 0
    %120 = vmatpush.msra.mxu0 %v115
    %121 = vmatpush.msra.mxu0 %v114
    %122 = vmatpush.msra.mxu0 %v113
    %123 = vmatpush.msra.mxu0 %v112
    %124 = vmatpush.msra.mxu0 %v111
    %125 = vmatpush.msra.mxu0 %v110
    %126 = vmatpush.msra.mxu0 %v109
    %127 = vmatpush.msra.mxu0 %v108
    %128 = vmatpush.msra.mxu0 %v107
    %129 = vmatpush.msra.mxu0 %v106
    %130 = vmatpush.msra.mxu0 %v105
    %131 = vmatpush.msra.mxu0 %v104
    %132 = vmatpush.msra.mxu0 %v103
    %133 = vmatpush.msra.mxu0 %v102
    %134 = vmatpush.msra.mxu0 %v101
    %135 = vmatpush.msra.mxu0 %v100
    %136 = vmatmul.f32.gmra.mxu0 %v99
    %v137 = vpop.f32.mrf.mxu0
    %v138 = vadd.f32 %v118, %v137
    %139 = vdwg.mxu0
    %140 = vst [vmem:[#allocation8] sm:$0xff] %v138
    // Predicated region
    $region34: #{tpu_custom_call.1} parent=1 // pred_check
      _
    $region35: #{tpu_custom_call.1} parent=1 // pred_check_branch
      %142 = sbr.rel (0) target = $region37
    $region36: #{tpu_custom_call.1} parent=1 // pred_region
      %144 = vsyncadd [#allocation4], 0
      %s146 = sshll.u32 [#allocation8], 4
      %s147 = int_to_ptr.vmem [resolvable:$true] %s146
      %s148 = sshll.u32 %s5, 4
      %s149 = int_to_ptr.hbm [resolvable:$true] %s148
      %151 = dma.vmem_to_hbm [thread:$0]  %s147, 128, %s149, [#allocation4]
    $region37: #{tpu_custom_call.1} parent=1 // pred_fallthru
      _
    // Predicated region
    $region38: #{tpu_custom_call.1} parent=1 // pred_check
      _
    $region39: #{tpu_custom_call.1} parent=1 // pred_check_branch
      %153 = sbr.rel (0) target = $region41
    $region40: #{tpu_custom_call.1} parent=1 // pred_region
      %155 = dma.done [#allocation4], 128
    $region41: #{tpu_custom_call.1} parent=1 // pred_fallthru
      _
    %156 = vsyncpa [#allocation3], 1
    %157 = vsyncpa [#allocation6], 1
    %158 = vsyncpa [#allocation4], 1

</llo_original>
